<compile_context>
chip_gen: v7x
topology: tpu7x:2x2x1
jax: 0.10.0
libtpu: 0.0.40
codegen_flags: <defaults>
</compile_context>

<pallas_src>
import jax
import jax.numpy as jnp
from jax.experimental import pallas as pl
from jax.experimental.pallas import tpu as pltpu

_LANES = 128                      # lane width: P and P*L are padded up to this
_D_PAD = 8                        # feature dim padded to one sublane
_HIGHEST = jax.lax.Precision.HIGHEST


def _round_up(x, m):
    return (x + m - 1) // m * m


def _lgmlvq_dist_kernel(x_ref, om_ref, py_ref, g_ref, dis_ref):
    """dis = ((PY - x @ OM)^2) @ G, with every array lane-dense (last dim 128)."""
    px = jnp.dot(x_ref[...], om_ref[...],
                 precision=_HIGHEST, preferred_element_type=jnp.float32)
    diff = py_ref[...] - px                       # (TILE_N, 128) f32, VPU
    dis_ref[...] = jnp.dot(diff * diff, g_ref[...],
                           precision=_HIGHEST, preferred_element_type=jnp.float32)


def lgmlvq_distances(x, om_pad, py_pad, g_pad, num_protos, *, tile_n=1024):
    """x: (N, D) samples; om_pad/py_pad/g_pad precomputed from (protos, omegas).

    Returns dis: (N, num_protos) squared local-omega distances.
    """
    n, d = x.shape
    x = x.astype(jnp.float32)
    if d < _D_PAD:                                # pad feature dim to a sublane
        x = jnp.pad(x, ((0, 0), (0, _D_PAD - d)))

    tile = min(tile_n, _round_up(n, 8))           # batch tile (multiple of 8)
    n_pad = _round_up(n, tile)
    if n_pad != n:
        x = jnp.pad(x, ((0, n_pad - n), (0, 0)))
    num_tiles = n_pad // tile

    out_shape = jax.ShapeDtypeStruct((n_pad, _LANES), jnp.float32)
    if num_tiles == 1:
        # Single tile: grid-less call, whole arrays live in VMEM.
        dis = pl.pallas_call(_lgmlvq_dist_kernel, out_shape=out_shape)(
            x, om_pad, py_pad, g_pad)
    else:
        dis = pl.pallas_call(
            _lgmlvq_dist_kernel,
            out_shape=out_shape,
            grid=(num_tiles,),
            in_specs=[
                pl.BlockSpec((tile, _D_PAD), lambda i: (i, 0)),
                pl.BlockSpec((_D_PAD, _LANES), lambda i: (0, 0)),
                pl.BlockSpec((1, _LANES), lambda i: (0, 0)),
                pl.BlockSpec((_LANES, _LANES), lambda i: (0, 0)),
            ],
            out_specs=pl.BlockSpec((tile, _LANES), lambda i: (i, 0)),
            compiler_params=pltpu.CompilerParams(
                dimension_semantics=("parallel",)),
        )(x, om_pad, py_pad, g_pad)
    return dis[:n, :num_protos]


class Model:
    """JAX port of the Local-GMLVQ torch module (deterministic synthetic init)."""

    def __init__(self, key, x_train, y_train):
        # prototype_distribution = [1, 2, 2] -> 5 prototypes, labels [0,1,1,2,2]
        dist = [1, 2, 2]
        self.plabels = jnp.array(
            [c for c, n in enumerate(dist) for _ in range(n)], dtype=jnp.int32
        )
        # 'stratified_random' initializer: each prototype is a randomly chosen
        # training sample of its class (deterministic via PRNGKey).
        protos = []
        for i, c in enumerate(self.plabels.tolist()):
            idx_c = jnp.nonzero(y_train == c, size=y_train.shape[0], fill_value=0)[0]
            n_c = int((y_train == c).sum())
            k = jax.random.fold_in(key, i)
            pick = jax.random.randint(k, (), 0, n_c)
            protos.append(x_train[idx_c[pick]])
        self.protos = jnp.stack(protos).astype(jnp.float32)                     # (5, 2)
        # omegas: eye_ initialization -> identity matrix per prototype.
        self.omegas = jnp.tile(jnp.eye(2, dtype=jnp.float32)[None], (5, 1, 1))  # (5,2,2)

        # One-time precompute of the lane-dense kernel operands (depends only
        # on protos/omegas, not on x) so forward() does no per-call reshapes.
        P, D, L = self.omegas.shape
        pl_dim = P * L
        # OM[d, p*L + l] = omegas[p, d, l]
        om_flat = jnp.transpose(self.omegas, (1, 0, 2)).reshape(D, pl_dim)
        # PY[0, p*L + l] = sum_d protos[p, d] * omegas[p, d, l]
        py = jnp.einsum("pd,pdl->pl", self.protos, self.omegas,
                        precision=_HIGHEST).reshape(1, pl_dim)
        # G[p*L + l, p] = 1  (sums the L latent columns of each prototype)
        g = jnp.repeat(jnp.eye(P, dtype=jnp.float32), L, axis=0)
        self._om_pad = jnp.zeros((_D_PAD, _LANES), jnp.float32).at[:D, :pl_dim].set(om_flat)
        self._py_pad = jnp.zeros((1, _LANES), jnp.float32).at[:, :pl_dim].set(py)
        self._g_pad = jnp.zeros((_LANES, _LANES), jnp.float32).at[:pl_dim, :P].set(g)
        self._num_protos = P

    def forward(self, x):
        dis = lgmlvq_distances(x, self._om_pad, self._py_pad, self._g_pad,
                               self._num_protos)
        return dis, self.plabels


def _reference_lomega_distance(x, protos, omegas):
    """Pure-JAX reference mirroring prototorch.functions.distances.lomega_distance."""
    projected_x = jnp.einsum("nd,pdl->pnl", x, omegas, precision=_HIGHEST)   # (P, N, L)
    projected_y = jnp.einsum("pd,pdl->pl", protos, omegas, precision=_HIGHEST)  # (P, L)
    diff = projected_y[:, None, :] - projected_x                             # (P, N, L)
    return jnp.sum(diff * diff, axis=2).T                                    # (N, P)


if __name__ == "__main__":
    key = jax.random.PRNGKey(0)
    k_data, k_proto, k_x, k_xbig = jax.random.split(key, 4)

    # Synthetic "iris-like" training data: 30 samples, 4 features, 3 classes.
    x_train_full = jax.random.normal(k_data, (30, 4), dtype=jnp.float32)
    y_train = jnp.repeat(jnp.arange(3, dtype=jnp.int32), 10)
    # x_train = x_train[:, [0, 2]]  (only sepal length / petal length)
    x_train = x_train_full[:, jnp.array([0, 2])]

    model = Model(k_proto, x_train, y_train)

    # Small batch: exercises the single-tile (grid-less) path.
    x_small = jax.random.normal(k_x, (8, 2), dtype=jnp.float32)
    dis_s, plabels = model.forward(x_small)
    dis_s = jax.block_until_ready(dis_s)
    ref_s = _reference_lomega_distance(x_small, model.protos, model.omegas)
    assert dis_s.shape == (8, 5)
    assert plabels.shape == (5,)
    assert jnp.allclose(dis_s, ref_s, atol=1e-5, rtol=1e-5)

    # Larger batch: exercises the tiled, "parallel"-grid pipelined path.
    x_big = jax.random.normal(k_xbig, (4096, 2), dtype=jnp.float32)
    dis_b, _ = model.forward(x_big)
    dis_b = jax.block_until_ready(dis_b)
    ref_b = _reference_lomega_distance(x_big, model.protos, model.omegas)
    assert dis_b.shape == (4096, 5)
    assert jnp.allclose(dis_b, ref_b, atol=1e-4, rtol=1e-4)

    print("KERNEL_OK")
</pallas_src>

<mosaic_0001>
module attributes {stable_mosaic.version = 11 : i64} {
  func.func @_lgmlvq_dist_kernel(%arg0: memref<8x8xf32, #tpu.memory_space<vmem>>, %arg1: memref<8x128xf32, #tpu.memory_space<vmem>>, %arg2: memref<1x128xf32, #tpu.memory_space<vmem>>, %arg3: memref<128x128xf32, #tpu.memory_space<vmem>>, %arg4: memref<8x128xf32, #tpu.memory_space<vmem>>) attributes {dimension_semantics = [], scalar_prefetch = 0 : i64, scratch_operands = 0 : i64, tpu.core_type = #tpu.core_type<tc>} {
    %c0 = arith.constant 0 : index
    %c0_0 = arith.constant 0 : index
    %0 = vector.load %arg0[%c0, %c0_0] : memref<8x8xf32, #tpu.memory_space<vmem>>, vector<8x8xf32>
    %c0_1 = arith.constant 0 : index
    %c0_2 = arith.constant 0 : index
    %1 = vector.load %arg1[%c0_1, %c0_2] : memref<8x128xf32, #tpu.memory_space<vmem>>, vector<8x128xf32>
    %cst = arith.constant dense<0.000000e+00> : vector<8x128xf32>
    %2 = tpu.matmul %0, %1, %cst {dimension_numbers = #tpu.dot_dimension_numbers<[1], [0], [0], [1], [0, 0, 1, 1], [], []>, precision = #tpu.contract_precision<fp32>} : vector<8x8xf32>, vector<8x128xf32>, vector<8x128xf32> -> vector<8x128xf32>
    %c0_3 = arith.constant 0 : index
    %c0_4 = arith.constant 0 : index
    %3 = vector.load %arg2[%c0_3, %c0_4] : memref<1x128xf32, #tpu.memory_space<vmem>>, vector<1x128xf32>
    %4 = vector.broadcast %3 : vector<1x128xf32> to vector<8x128xf32>
    %5 = arith.subf %4, %2 : vector<8x128xf32>
    %6 = arith.mulf %5, %5 : vector<8x128xf32>
    %c0_5 = arith.constant 0 : index
    %c0_6 = arith.constant 0 : index
    %7 = vector.load %arg3[%c0_5, %c0_6] : memref<128x128xf32, #tpu.memory_space<vmem>>, vector<128x128xf32>
    %cst_7 = arith.constant dense<0.000000e+00> : vector<8x128xf32>
    %8 = tpu.matmul %6, %7, %cst_7 {dimension_numbers = #tpu.dot_dimension_numbers<[1], [0], [0], [1], [0, 0, 1, 1], [], []>, precision = #tpu.contract_precision<fp32>} : vector<8x128xf32>, vector<128x128xf32>, vector<8x128xf32> -> vector<8x128xf32>
    %c0_8 = arith.constant 0 : index
    %c0_9 = arith.constant 0 : index
    %9 = vector.load %arg4[%c0_8, %c0_9] : memref<8x128xf32, #tpu.memory_space<vmem>>, vector<8x128xf32>
    tpu.vector_store %arg4[%c0_8, %c0_9], %8 {strides = array<i32>} : memref<8x128xf32, #tpu.memory_space<vmem>>, vector<8x128xf32>,
    return
  }
}

</mosaic_0001>

<llo_original>
// kernel: tpu_custom_call.1
$region0: #{tpu_custom_call.1}
  #allocation0 [shape = 'u32[]', space=smem, size = 0x4, offset = 0x4, fixed_abs, tag = 'smem constant byte address 0x4 - core index']
  #allocation1 [shape = 'u32[144,128]{1,0:T(1,128)}', space=vmem, size = 0x12000, scoped, tag = 'internal scratch']
  %s0 = inlined_call_operand.hbm [shape: f32[8,8], index: 0, kind: input, shape index: {}]
  %s1 = inlined_call_operand.hbm [shape: f32[8,128], index: 1, kind: input, shape index: {}]
  %s2 = inlined_call_operand.vmem [shape: f32[1,128], index: 2, kind: input, shape index: {}]
  %s3 = inlined_call_operand.hbm [shape: f32[128,128], index: 3, kind: input, shape index: {}]
  %s4 = inlined_call_operand.hbm [shape: f32[8,128], index: 4, kind: output, shape index: {}]
  %s5 = sld [smem:[#allocation0]]
  $region38: #{tpu_custom_call.1} parent=0
    _
  %s7 = ssub.s32 1, %s5
  %s8 = scalar_select 0, %s7, %s5
  $region1: #{tpu_custom_call.1} parent=0
    #allocation2 [shape = 'u8[4096]{0}', space=vmem, size = 0x1000, scoped, tag = 'input window, operand 0, single buffered']
    #allocation3 [shape = 's32[1]{0}', space=sflag, size = 0x4, scoped, tag = 'scoped memory for tpu_custom_call.1']
    #allocation4 [shape = 's32[1]{0}', space=sflag, size = 0x4, scoped, tag = 'scoped memory for tpu_custom_call.1']
    #allocation5 [shape = 'u8[4096]{0}', space=vmem, size = 0x1000, scoped, tag = 'input window, operand 1, single buffered']
    #allocation6 [shape = 's32[1]{0}', space=sflag, size = 0x4, scoped, tag = 'scoped memory for tpu_custom_call.1']
    #allocation7 [shape = 'u8[65536]{0}', space=vmem, size = 0x10000, scoped, tag = 'input window, operand 3, single buffered']
    #allocation8 [shape = 'u8[4096]{0}', space=vmem, size = 0x1000, scoped, tag = 'output window, operand 0, single buffered']
    %9 = vsyncpa [#allocation3], 0
    %10 = vsyncpa [#allocation6], 0
    %11 = vsyncpa [#allocation4], 0
    // Predicated region
    $region2: #{tpu_custom_call.1} parent=1 // pred_check
      _
    $region3: #{tpu_custom_call.1} parent=1 // pred_check_branch
      %13 = sbr.rel (0) target = $region5
    $region4: #{tpu_custom_call.1} parent=1 // pred_region
      %s15 = ssub.s32 128, 128
      %16 = vsyncadd [#allocation3], %s15
      %s18 = sshll.u32 [#allocation2], 4
      %s19 = int_to_ptr.vmem [resolvable:$true] %s18
      %21 = dma.hbm_to_vmem [thread:$0]  %s0, 128, %s19, [#allocation3]
    $region5: #{tpu_custom_call.1} parent=1 // pred_fallthru
      _
    // Predicated region
    $region6: #{tpu_custom_call.1} parent=1 // pred_check
      _
    $region7: #{tpu_custom_call.1} parent=1 // pred_check_branch
      %23 = sbr.rel (0) target = $region9
    $region8: #{tpu_custom_call.1} parent=1 // pred_region
      %s25 = ssub.s32 128, 128
      %26 = vsyncadd [#allocation6], %s25
      %s28 = sshll.u32 [#allocation5], 4
      %s29 = int_to_ptr.vmem [resolvable:$true] %s28
      %31 = dma.hbm_to_vmem [thread:$0]  %s1, 128, %s29, [#allocation6]
    $region9: #{tpu_custom_call.1} parent=1 // pred_fallthru
      _
    // Predicated region
    $region10: #{tpu_custom_call.1} parent=1 // pred_check
      _
    $region11: #{tpu_custom_call.1} parent=1 // pred_check_branch
      %33 = sbr.rel (0) target = $region13
    $region12: #{tpu_custom_call.1} parent=1 // pred_region
      _
    $region13: #{tpu_custom_call.1} parent=1 // pred_fallthru
      _
    // Predicated region
    $region14: #{tpu_custom_call.1} parent=1 // pred_check
      _
    $region15: #{tpu_custom_call.1} parent=1 // pred_check_branch
      %35 = sbr.rel (0) target = $region17
    $region16: #{tpu_custom_call.1} parent=1 // pred_region
      %s37 = ssub.s32 2048, 2048
      %38 = vsyncadd [#allocation6], %s37
      %s39 = sshll.u32 [#allocation7], 4
      %s40 = int_to_ptr.vmem [resolvable:$true] %s39
      %45 = dma.hbm_to_vmem [thread:$0]  %s3, 2048, %s40, [#allocation6], 128, 128, 8
    $region17: #{tpu_custom_call.1} parent=1 // pred_fallthru
      _
    // Predicated region
    $region18: #{tpu_custom_call.1} parent=1 // pred_check
      _
    $region19: #{tpu_custom_call.1} parent=1 // pred_check_branch
      %47 = sbr.rel (0) target = $region21
    $region20: #{tpu_custom_call.1} parent=1 // pred_region
      %48 = dma.done [#allocation3], 128
    $region21: #{tpu_custom_call.1} parent=1 // pred_fallthru
      _
    // Predicated region
    $region22: #{tpu_custom_call.1} parent=1 // pred_check
      _
    $region23: #{tpu_custom_call.1} parent=1 // pred_check_branch
      %50 = sbr.rel (0) target = $region25
    $region24: #{tpu_custom_call.1} parent=1 // pred_region
      %51 = dma.done [#allocation6], 128
    $region25: #{tpu_custom_call.1} parent=1 // pred_fallthru
      _
    // Predicated region
    $region26: #{tpu_custom_call.1} parent=1 // pred_check
      _
    $region27: #{tpu_custom_call.1} parent=1 // pred_check_branch
      %53 = sbr.rel (0) target = $region29
    $region28: #{tpu_custom_call.1} parent=1 // pred_region
      %54 = dma.done [#allocation6], 2048
    $region29: #{tpu_custom_call.1} parent=1 // pred_fallthru
      _
    %v55 = vld [vmem:[#allocation2] sm:$0xff]
    %v56 = vld [vmem:[#allocation5] sm:$0xff]
    %vm57 = vcmask 64512
    %v59 = vsel %vm57, %v55, 0
    %61 = vmatprep.subr.mxu0 0.0
    %v62 = vand.u32 %v56, 4294901760
    %63 = vmatpush1.msra.mxu0 %v62
    %64 = vmatprep.subr.mxu0 0.0
    %65 = vmatpush1.msra.mxu0 0.0
    %66 = vmatprep.subr.mxu0 0.0
    %67 = vmatpush1.msra.mxu0 0.0
    %68 = vmatprep.subr.mxu0 0.0
    %69 = vmatpush1.msra.mxu0 0.0
    %70 = vmatprep.subr.mxu0 0.0
    %71 = vmatpush1.msra.mxu0 0.0
    %72 = vmatprep.subr.mxu0 0.0
    %73 = vmatpush1.msra.mxu0 0.0
    %74 = vmatprep.subr.mxu0 0.0
    %75 = vmatpush1.msra.mxu0 0.0
    %76 = vmatprep.subr.mxu0 0.0
    %77 = vmatpush1.msra.mxu0 0.0
    %78 = vmatprep.subr.mxu0 0.0
    %79 = vmatpush1.msra.mxu0 0.0
    %80 = vmatprep.subr.mxu0 0.0
    %81 = vmatpush1.msra.mxu0 0.0
    %82 = vmatprep.subr.mxu0 0.0
    %83 = vmatpush1.msra.mxu0 0.0
    %84 = vmatprep.subr.mxu0 0.0
    %85 = vmatpush1.msra.mxu0 0.0
    %86 = vmatprep.subr.mxu0 0.0
    %87 = vmatpush1.msra.mxu0 0.0
    %88 = vmatprep.subr.mxu0 0.0
    %89 = vmatpush1.msra.mxu0 0.0
    %90 = vmatprep.subr.mxu0 0.0
    %91 = vmatpush1.msra.mxu0 0.0
    %92 = vmatprep.subr.mxu0 0.0
    %93 = vmatpush1.msra.mxu0 0.0
    %94 = vmatprep.subr.mxu0 0.0
    %95 = vmatpush1.msra.mxu0 0.0
    %96 = vmatprep.subr.mxu0 0.0
    %97 = vmatpush1.msra.mxu0 0.0
    %98 = vmatprep.subr.mxu0 0.0
    %99 = vmatpush1.msra.mxu0 0.0
    %100 = vmatprep.subr.mxu0 0.0
    %101 = vmatpush1.msra.mxu0 0.0
    %102 = vmatprep.subr.mxu0 0.0
    %103 = vmatpush1.msra.mxu0 0.0
    %104 = vmatprep.subr.mxu0 0.0
    %105 = vmatpush1.msra.mxu0 0.0
    %106 = vmatprep.subr.mxu0 0.0
    %107 = vmatpush1.msra.mxu0 0.0
    %108 = vmatprep.subr.mxu0 0.0
    %109 = vmatpush1.msra.mxu0 0.0
    %110 = vmatprep.subr.mxu0 0.0
    %111 = vmatpush1.msra.mxu0 0.0
    %112 = vmatprep.subr.mxu0 0.0
    %113 = vmatpush1.msra.mxu0 0.0
    %114 = vmatprep.subr.mxu0 0.0
    %115 = vmatpush1.msra.mxu0 0.0
    %116 = vmatprep.subr.mxu0 0.0
    %117 = vmatpush1.msra.mxu0 0.0
    %118 = vmatprep.subr.mxu0 0.0
    %119 = vmatpush1.msra.mxu0 0.0
    %120 = vmatprep.subr.mxu0 0.0
    %121 = vmatpush1.msra.mxu0 0.0
    %122 = vmatprep.subr.mxu0 0.0
    %123 = vmatpush1.msra.mxu0 0.0
    %124 = vmatprep.subr.mxu0 0.0
    %125 = vmatpush1.msra.mxu0 0.0
    %126 = vmatprep.mubr.f32.mxu0 0.0
    %v127 = vand.u32 %v59, 4294901760
    %v128 = vsub.f32 %v59, %v127
    %v129 = vand.u32 %v128, 4294901760
    %v130 = vsub.f32 %v128, %v129
    %v131 = vand.u32 %v130, 4294901760
    %132 = vmatmul.mubr.f32.gmra.mrb[0].mxu0 %v131
    %v133 = vpop.f32.mrb[0].mxu0
    %v134 = vadd.f32 0.0, %v133
    %v135 = vpop.f32.mrb[0].mxu0
    %136 = vdwg.mxu0
    %137 = vmatprep.subr.mxu0 0.0
    %v138 = vand.u32 %v56, 4294901760
    %v139 = vsub.f32 %v56, %v138
    %v140 = vand.u32 %v139, 4294901760
    %v141 = vsub.f32 %v139, %v140
    %v142 = vand.u32 %v141, 4294901760
    %143 = vmatpush1.msra.mxu0 %v142
    %144 = vmatprep.subr.mxu0 0.0
    %145 = vmatpush1.msra.mxu0 0.0
    %146 = vmatprep.subr.mxu0 0.0
    %147 = vmatpush1.msra.mxu0 0.0
    %148 = vmatprep.subr.mxu0 0.0
    %149 = vmatpush1.msra.mxu0 0.0
    %150 = vmatprep.subr.mxu0 0.0
    %151 = vmatpush1.msra.mxu0 0.0
    %152 = vmatprep.subr.mxu0 0.0
    %153 = vmatpush1.msra.mxu0 0.0
    %154 = vmatprep.subr.mxu0 0.0
    %155 = vmatpush1.msra.mxu0 0.0
    %156 = vmatprep.subr.mxu0 0.0
    %157 = vmatpush1.msra.mxu0 0.0
    %158 = vmatprep.subr.mxu0 0.0
    %159 = vmatpush1.msra.mxu0 0.0
    %160 = vmatprep.subr.mxu0 0.0
    %161 = vmatpush1.msra.mxu0 0.0
    %162 = vmatprep.subr.mxu0 0.0
    %163 = vmatpush1.msra.mxu0 0.0
    %164 = vmatprep.subr.mxu0 0.0
    %165 = vmatpush1.msra.mxu0 0.0
    %166 = vmatprep.subr.mxu0 0.0
    %167 = vmatpush1.msra.mxu0 0.0
    %168 = vmatprep.subr.mxu0 0.0
    %169 = vmatpush1.msra.mxu0 0.0
    %170 = vmatprep.subr.mxu0 0.0
    %171 = vmatpush1.msra.mxu0 0.0
    %172 = vmatprep.subr.mxu0 0.0
    %173 = vmatpush1.msra.mxu0 0.0
    %174 = vmatprep.subr.mxu0 0.0
    %175 = vmatpush1.msra.mxu0 0.0
    %176 = vmatprep.subr.mxu0 0.0
    %177 = vmatpush1.msra.mxu0 0.0
    %178 = vmatprep.subr.mxu0 0.0
    %179 = vmatpush1.msra.mxu0 0.0
    %180 = vmatprep.subr.mxu0 0.0
    %181 = vmatpush1.msra.mxu0 0.0
    %182 = vmatprep.subr.mxu0 0.0
    %183 = vmatpush1.msra.mxu0 0.0
    %184 = vmatprep.subr.mxu0 0.0
    %185 = vmatpush1.msra.mxu0 0.0
    %186 = vmatprep.subr.mxu0 0.0
    %187 = vmatpush1.msra.mxu0 0.0
    %188 = vmatprep.subr.mxu0 0.0
    %189 = vmatpush1.msra.mxu0 0.0
    %190 = vmatprep.subr.mxu0 0.0
    %191 = vmatpush1.msra.mxu0 0.0
    %192 = vmatprep.subr.mxu0 0.0
    %193 = vmatpush1.msra.mxu0 0.0
    %194 = vmatprep.subr.mxu0 0.0
    %195 = vmatpush1.msra.mxu0 0.0
    %196 = vmatprep.subr.mxu0 0.0
    %197 = vmatpush1.msra.mxu0 0.0
    %198 = vmatprep.subr.mxu0 0.0
    %199 = vmatpush1.msra.mxu0 0.0
    %200 = vmatprep.subr.mxu0 0.0
    %201 = vmatpush1.msra.mxu0 0.0
    %202 = vmatprep.subr.mxu0 0.0
    %203 = vmatpush1.msra.mxu0 0.0
    %204 = vmatprep.subr.mxu0 0.0
    %205 = vmatpush1.msra.mxu0 0.0
    %206 = vmatprep.mubr.f32.mxu0 0.0
    %v207 = vand.u32 %v59, 4294901760
    %208 = vmatmul.mubr.f32.gmra.mrb[0].mxu0 %v207
    %v209 = vpop.f32.mrb[0].mxu0
    %v210 = vadd.f32 %v134, %v209
    %v211 = vpop.f32.mrb[0].mxu0
    %212 = vdwg.mxu0
    %213 = vmatprep.subr.mxu0 0.0
    %v214 = vand.u32 %v56, 4294901760
    %v215 = vsub.f32 %v56, %v214
    %216 = vmatpush1.msra.mxu0 %v215
    %217 = vmatprep.subr.mxu0 0.0
    %218 = vmatpush1.msra.mxu0 0.0
    %219 = vmatprep.subr.mxu0 0.0
    %220 = vmatpush1.msra.mxu0 0.0
    %221 = vmatprep.subr.mxu0 0.0
    %222 = vmatpush1.msra.mxu0 0.0
    %223 = vmatprep.subr.mxu0 0.0
    %224 = vmatpush1.msra.mxu0 0.0
    %225 = vmatprep.subr.mxu0 0.0
    %226 = vmatpush1.msra.mxu0 0.0
    %227 = vmatprep.subr.mxu0 0.0
    %228 = vmatpush1.msra.mxu0 0.0
    %229 = vmatprep.subr.mxu0 0.0
    %230 = vmatpush1.msra.mxu0 0.0
    %231 = vmatprep.subr.mxu0 0.0
    %232 = vmatpush1.msra.mxu0 0.0
    %233 = vmatprep.subr.mxu0 0.0
    %234 = vmatpush1.msra.mxu0 0.0
    %235 = vmatprep.subr.mxu0 0.0
    %236 = vmatpush1.msra.mxu0 0.0
    %237 = vmatprep.subr.mxu0 0.0
    %238 = vmatpush1.msra.mxu0 0.0
    %239 = vmatprep.subr.mxu0 0.0
    %240 = vmatpush1.msra.mxu0 0.0
    %241 = vmatprep.subr.mxu0 0.0
    %242 = vmatpush1.msra.mxu0 0.0
    %243 = vmatprep.subr.mxu0 0.0
    %244 = vmatpush1.msra.mxu0 0.0
    %245 = vmatprep.subr.mxu0 0.0
    %246 = vmatpush1.msra.mxu0 0.0
    %247 = vmatprep.subr.mxu0 0.0
    %248 = vmatpush1.msra.mxu0 0.0
    %249 = vmatprep.subr.mxu0 0.0
    %250 = vmatpush1.msra.mxu0 0.0
    %251 = vmatprep.subr.mxu0 0.0
    %252 = vmatpush1.msra.mxu0 0.0
    %253 = vmatprep.subr.mxu0 0.0
    %254 = vmatpush1.msra.mxu0 0.0
    %255 = vmatprep.subr.mxu0 0.0
    %256 = vmatpush1.msra.mxu0 0.0
    %257 = vmatprep.subr.mxu0 0.0
    %258 = vmatpush1.msra.mxu0 0.0
    %259 = vmatprep.subr.mxu0 0.0
    %260 = vmatpush1.msra.mxu0 0.0
    %261 = vmatprep.subr.mxu0 0.0
    %262 = vmatpush1.msra.mxu0 0.0
    %263 = vmatprep.subr.mxu0 0.0
    %264 = vmatpush1.msra.mxu0 0.0
    %265 = vmatprep.subr.mxu0 0.0
    %266 = vmatpush1.msra.mxu0 0.0
    %267 = vmatprep.subr.mxu0 0.0
    %268 = vmatpush1.msra.mxu0 0.0
    %269 = vmatprep.subr.mxu0 0.0
    %270 = vmatpush1.msra.mxu0 0.0
    %271 = vmatprep.subr.mxu0 0.0
    %272 = vmatpush1.msra.mxu0 0.0
    %273 = vmatprep.subr.mxu0 0.0
    %274 = vmatpush1.msra.mxu0 0.0
    %275 = vmatprep.subr.mxu0 0.0
    %276 = vmatpush1.msra.mxu0 0.0
    %277 = vmatprep.subr.mxu0 0.0
    %278 = vmatpush1.msra.mxu0 0.0
    %279 = vmatprep.mubr.f32.mxu0 0.0
    %v280 = vand.u32 %v59, 4294901760
    %v281 = vsub.f32 %v59, %v280
    %282 = vmatmul.mubr.f32.gmra.mrb[0].mxu0 %v281
    %v283 = vpop.f32.mrb[0].mxu0
    %v284 = vadd.f32 %v210, %v283
    %v285 = vpop.f32.mrb[0].mxu0
    %286 = vdwg.mxu0
    %287 = vmatprep.subr.mxu0 0.0
    %v288 = vand.u32 %v56, 4294901760
    %289 = vmatpush1.msra.mxu0 %v288
    %290 = vmatprep.subr.mxu0 0.0
    %291 = vmatpush1.msra.mxu0 0.0
    %292 = vmatprep.subr.mxu0 0.0
    %293 = vmatpush1.msra.mxu0 0.0
    %294 = vmatprep.subr.mxu0 0.0
    %295 = vmatpush1.msra.mxu0 0.0
    %296 = vmatprep.subr.mxu0 0.0
    %297 = vmatpush1.msra.mxu0 0.0
    %298 = vmatprep.subr.mxu0 0.0
    %299 = vmatpush1.msra.mxu0 0.0
    %300 = vmatprep.subr.mxu0 0.0
    %301 = vmatpush1.msra.mxu0 0.0
    %302 = vmatprep.subr.mxu0 0.0
    %303 = vmatpush1.msra.mxu0 0.0
    %304 = vmatprep.subr.mxu0 0.0
    %305 = vmatpush1.msra.mxu0 0.0
    %306 = vmatprep.subr.mxu0 0.0
    %307 = vmatpush1.msra.mxu0 0.0
    %308 = vmatprep.subr.mxu0 0.0
    %309 = vmatpush1.msra.mxu0 0.0
    %310 = vmatprep.subr.mxu0 0.0
    %311 = vmatpush1.msra.mxu0 0.0
    %312 = vmatprep.subr.mxu0 0.0
    %313 = vmatpush1.msra.mxu0 0.0
    %314 = vmatprep.subr.mxu0 0.0
    %315 = vmatpush1.msra.mxu0 0.0
    %316 = vmatprep.subr.mxu0 0.0
    %317 = vmatpush1.msra.mxu0 0.0
    %318 = vmatprep.subr.mxu0 0.0
    %319 = vmatpush1.msra.mxu0 0.0
    %320 = vmatprep.subr.mxu0 0.0
    %321 = vmatpush1.msra.mxu0 0.0
    %322 = vmatprep.subr.mxu0 0.0
    %323 = vmatpush1.msra.mxu0 0.0
    %324 = vmatprep.subr.mxu0 0.0
    %325 = vmatpush1.msra.mxu0 0.0
    %326 = vmatprep.subr.mxu0 0.0
    %327 = vmatpush1.msra.mxu0 0.0
    %328 = vmatprep.subr.mxu0 0.0
    %329 = vmatpush1.msra.mxu0 0.0
    %330 = vmatprep.subr.mxu0 0.0
    %331 = vmatpush1.msra.mxu0 0.0
    %332 = vmatprep.subr.mxu0 0.0
    %333 = vmatpush1.msra.mxu0 0.0
    %334 = vmatprep.subr.mxu0 0.0
    %335 = vmatpush1.msra.mxu0 0.0
    %336 = vmatprep.subr.mxu0 0.0
    %337 = vmatpush1.msra.mxu0 0.0
    %338 = vmatprep.subr.mxu0 0.0
    %339 = vmatpush1.msra.mxu0 0.0
    %340 = vmatprep.subr.mxu0 0.0
    %341 = vmatpush1.msra.mxu0 0.0
    %342 = vmatprep.subr.mxu0 0.0
    %343 = vmatpush1.msra.mxu0 0.0
    %344 = vmatprep.subr.mxu0 0.0
    %345 = vmatpush1.msra.mxu0 0.0
    %346 = vmatprep.subr.mxu0 0.0
    %347 = vmatpush1.msra.mxu0 0.0
    %348 = vmatprep.subr.mxu0 0.0
    %349 = vmatpush1.msra.mxu0 0.0
    %350 = vmatprep.subr.mxu0 0.0
    %351 = vmatpush1.msra.mxu0 0.0
    %352 = vmatprep.mubr.f32.mxu0 0.0
    %v353 = vand.u32 %v59, 4294901760
    %v354 = vsub.f32 %v59, %v353
    %v355 = vand.u32 %v354, 4294901760
    %356 = vmatmul.mubr.f32.gmra.mrb[0].mxu0 %v355
    %v357 = vpop.f32.mrb[0].mxu0
    %v358 = vadd.f32 %v284, %v357
    %v359 = vpop.f32.mrb[0].mxu0
    %360 = vdwg.mxu0
    %361 = vmatprep.subr.mxu0 0.0
    %v362 = vand.u32 %v56, 4294901760
    %v363 = vsub.f32 %v56, %v362
    %v364 = vand.u32 %v363, 4294901760
    %365 = vmatpush1.msra.mxu0 %v364
    %366 = vmatprep.subr.mxu0 0.0
    %367 = vmatpush1.msra.mxu0 0.0
    %368 = vmatprep.subr.mxu0 0.0
    %369 = vmatpush1.msra.mxu0 0.0
    %370 = vmatprep.subr.mxu0 0.0
    %371 = vmatpush1.msra.mxu0 0.0
    %372 = vmatprep.subr.mxu0 0.0
    %373 = vmatpush1.msra.mxu0 0.0
    %374 = vmatprep.subr.mxu0 0.0
    %375 = vmatpush1.msra.mxu0 0.0
    %376 = vmatprep.subr.mxu0 0.0
    %377 = vmatpush1.msra.mxu0 0.0
    %378 = vmatprep.subr.mxu0 0.0
    %379 = vmatpush1.msra.mxu0 0.0
    %380 = vmatprep.subr.mxu0 0.0
    %381 = vmatpush1.msra.mxu0 0.0
    %382 = vmatprep.subr.mxu0 0.0
    %383 = vmatpush1.msra.mxu0 0.0
    %384 = vmatprep.subr.mxu0 0.0
    %385 = vmatpush1.msra.mxu0 0.0
    %386 = vmatprep.subr.mxu0 0.0
    %387 = vmatpush1.msra.mxu0 0.0
    %388 = vmatprep.subr.mxu0 0.0
    %389 = vmatpush1.msra.mxu0 0.0
    %390 = vmatprep.subr.mxu0 0.0
    %391 = vmatpush1.msra.mxu0 0.0
    %392 = vmatprep.subr.mxu0 0.0
    %393 = vmatpush1.msra.mxu0 0.0
    %394 = vmatprep.subr.mxu0 0.0
    %395 = vmatpush1.msra.mxu0 0.0
    %396 = vmatprep.subr.mxu0 0.0
    %397 = vmatpush1.msra.mxu0 0.0
    %398 = vmatprep.subr.mxu0 0.0
    %399 = vmatpush1.msra.mxu0 0.0
    %400 = vmatprep.subr.mxu0 0.0
    %401 = vmatpush1.msra.mxu0 0.0
    %402 = vmatprep.subr.mxu0 0.0
    %403 = vmatpush1.msra.mxu0 0.0
    %404 = vmatprep.subr.mxu0 0.0
    %405 = vmatpush1.msra.mxu0 0.0
    %406 = vmatprep.subr.mxu0 0.0
    %407 = vmatpush1.msra.mxu0 0.0
    %408 = vmatprep.subr.mxu0 0.0
    %409 = vmatpush1.msra.mxu0 0.0
    %410 = vmatprep.subr.mxu0 0.0
    %411 = vmatpush1.msra.mxu0 0.0
    %412 = vmatprep.subr.mxu0 0.0
    %413 = vmatpush1.msra.mxu0 0.0
    %414 = vmatprep.subr.mxu0 0.0
    %415 = vmatpush1.msra.mxu0 0.0
    %416 = vmatprep.subr.mxu0 0.0
    %417 = vmatpush1.msra.mxu0 0.0
    %418 = vmatprep.subr.mxu0 0.0
    %419 = vmatpush1.msra.mxu0 0.0
    %420 = vmatprep.subr.mxu0 0.0
    %421 = vmatpush1.msra.mxu0 0.0
    %422 = vmatprep.subr.mxu0 0.0
    %423 = vmatpush1.msra.mxu0 0.0
    %424 = vmatprep.subr.mxu0 0.0
    %425 = vmatpush1.msra.mxu0 0.0
    %426 = vmatprep.subr.mxu0 0.0
    %427 = vmatpush1.msra.mxu0 0.0
    %428 = vmatprep.mubr.f32.mxu0 0.0
    %v429 = vand.u32 %v59, 4294901760
    %430 = vmatmul.mubr.f32.gmra.mrb[0].mxu0 %v429
    %v431 = vpop.f32.mrb[0].mxu0
    %v432 = vadd.f32 %v358, %v431
    %v433 = vpop.f32.mrb[0].mxu0
    %434 = vdwg.mxu0
    %435 = vmatprep.subr.mxu0 0.0
    %v436 = vand.u32 %v56, 4294901760
    %437 = vmatpush1.msra.mxu0 %v436
    %438 = vmatprep.subr.mxu0 0.0
    %439 = vmatpush1.msra.mxu0 0.0
    %440 = vmatprep.subr.mxu0 0.0
    %441 = vmatpush1.msra.mxu0 0.0
    %442 = vmatprep.subr.mxu0 0.0
    %443 = vmatpush1.msra.mxu0 0.0
    %444 = vmatprep.subr.mxu0 0.0
    %445 = vmatpush1.msra.mxu0 0.0
    %446 = vmatprep.subr.mxu0 0.0
    %447 = vmatpush1.msra.mxu0 0.0
    %448 = vmatprep.subr.mxu0 0.0
    %449 = vmatpush1.msra.mxu0 0.0
    %450 = vmatprep.subr.mxu0 0.0
    %451 = vmatpush1.msra.mxu0 0.0
    %452 = vmatprep.subr.mxu0 0.0
    %453 = vmatpush1.msra.mxu0 0.0
    %454 = vmatprep.subr.mxu0 0.0
    %455 = vmatpush1.msra.mxu0 0.0
    %456 = vmatprep.subr.mxu0 0.0
    %457 = vmatpush1.msra.mxu0 0.0
    %458 = vmatprep.subr.mxu0 0.0
    %459 = vmatpush1.msra.mxu0 0.0
    %460 = vmatprep.subr.mxu0 0.0
    %461 = vmatpush1.msra.mxu0 0.0
    %462 = vmatprep.subr.mxu0 0.0
    %463 = vmatpush1.msra.mxu0 0.0
    %464 = vmatprep.subr.mxu0 0.0
    %465 = vmatpush1.msra.mxu0 0.0
    %466 = vmatprep.subr.mxu0 0.0
    %467 = vmatpush1.msra.mxu0 0.0
    %468 = vmatprep.subr.mxu0 0.0
    %469 = vmatpush1.msra.mxu0 0.0
    %470 = vmatprep.subr.mxu0 0.0
    %471 = vmatpush1.msra.mxu0 0.0
    %472 = vmatprep.subr.mxu0 0.0
    %473 = vmatpush1.msra.mxu0 0.0
    %474 = vmatprep.subr.mxu0 0.0
    %475 = vmatpush1.msra.mxu0 0.0
    %476 = vmatprep.subr.mxu0 0.0
    %477 = vmatpush1.msra.mxu0 0.0
    %478 = vmatprep.subr.mxu0 0.0
    %479 = vmatpush1.msra.mxu0 0.0
    %480 = vmatprep.subr.mxu0 0.0
    %481 = vmatpush1.msra.mxu0 0.0
    %482 = vmatprep.subr.mxu0 0.0
    %483 = vmatpush1.msra.mxu0 0.0
    %484 = vmatprep.subr.mxu0 0.0
    %485 = vmatpush1.msra.mxu0 0.0
    %486 = vmatprep.subr.mxu0 0.0
    %487 = vmatpush1.msra.mxu0 0.0
    %488 = vmatprep.subr.mxu0 0.0
    %489 = vmatpush1.msra.mxu0 0.0
    %490 = vmatprep.subr.mxu0 0.0
    %491 = vmatpush1.msra.mxu0 0.0
    %492 = vmatprep.subr.mxu0 0.0
    %493 = vmatpush1.msra.mxu0 0.0
    %494 = vmatprep.subr.mxu0 0.0
    %495 = vmatpush1.msra.mxu0 0.0
    %496 = vmatprep.subr.mxu0 0.0
    %497 = vmatpush1.msra.mxu0 0.0
    %498 = vmatprep.subr.mxu0 0.0
    %499 = vmatpush1.msra.mxu0 0.0
    %500 = vmatprep.mubr.f32.mxu0 0.0
    %v501 = vand.u32 %v59, 4294901760
    %502 = vmatmul.mubr.f32.gmra.mrb[0].mxu0 %v501
    %v503 = vpop.f32.mrb[0].mxu0
    %v504 = vadd.f32 %v432, %v503
    %v505 = vpop.f32.mrb[0].mxu0
    %506 = vdwg.mxu0
    %v507 = vld [vmem:[%s2] sm:$0x1]
    %v509 = vlaneseq
    %v510 = vshrl.u32 %v509, 7
    %v511 = vsub.s32 0, %v510
    %v512 = vrot.slane %v507, %v511
    %v514 = vsub.f32 %v512, %v504
    %v515 = vmul.f32 %v514, %v514
    %v516 = vld [vmem:[#allocation7] sm:$0xff]
    %v517 = vld [vmem:[#allocation7 + $0x8] sm:$0xff]
    %v518 = vld [vmem:[#allocation7 + $0x10] sm:$0xff]
    %v519 = vld [vmem:[#allocation7 + $0x18] sm:$0xff]
    %v520 = vld [vmem:[#allocation7 + $0x20] sm:$0xff]
    %v521 = vld [vmem:[#allocation7 + $0x28] sm:$0xff]
    %v522 = vld [vmem:[#allocation7 + $0x30] sm:$0xff]
    %v523 = vld [vmem:[#allocation7 + $0x38] sm:$0xff]
    %v524 = vld [vmem:[#allocation7 + $0x40] sm:$0xff]
    %v525 = vld [vmem:[#allocation7 + $0x48] sm:$0xff]
    %v526 = vld [vmem:[#allocation7 + $0x50] sm:$0xff]
    %v527 = vld [vmem:[#allocation7 + $0x58] sm:$0xff]
    %v528 = vld [vmem:[#allocation7 + $0x60] sm:$0xff]
    %v529 = vld [vmem:[#allocation7 + $0x68] sm:$0xff]
    %v530 = vld [vmem:[#allocation7 + $0x70] sm:$0xff]
    %v531 = vld [vmem:[#allocation7 + $0x78] sm:$0xff]
    %532 = vmatprep.subr.mxu0 0.0
    %v533 = vand.u32 %v516, 4294901760
    %534 = vmatpush1.msra.mxu0 %v533
    %535 = vmatprep.subr.mxu0 0.0
    %v536 = vand.u32 %v517, 4294901760
    %537 = vmatpush1.msra.mxu0 %v536
    %538 = vmatprep.subr.mxu0 0.0
    %v539 = vand.u32 %v518, 4294901760
    %540 = vmatpush1.msra.mxu0 %v539
    %541 = vmatprep.subr.mxu0 0.0
    %v542 = vand.u32 %v519, 4294901760
    %543 = vmatpush1.msra.mxu0 %v542
    %544 = vmatprep.subr.mxu0 0.0
    %v545 = vand.u32 %v520, 4294901760
    %546 = vmatpush1.msra.mxu0 %v545
    %547 = vmatprep.subr.mxu0 0.0
    %v548 = vand.u32 %v521, 4294901760
    %549 = vmatpush1.msra.mxu0 %v548
    %550 = vmatprep.subr.mxu0 0.0
    %v551 = vand.u32 %v522, 4294901760
    %552 = vmatpush1.msra.mxu0 %v551
    %553 = vmatprep.subr.mxu0 0.0
    %v554 = vand.u32 %v523, 4294901760
    %555 = vmatpush1.msra.mxu0 %v554
    %556 = vmatprep.subr.mxu0 0.0
    %v557 = vand.u32 %v524, 4294901760
    %558 = vmatpush1.msra.mxu0 %v557
    %559 = vmatprep.subr.mxu0 0.0
    %v560 = vand.u32 %v525, 4294901760
    %561 = vmatpush1.msra.mxu0 %v560
    %562 = vmatprep.subr.mxu0 0.0
    %v563 = vand.u32 %v526, 4294901760
    %564 = vmatpush1.msra.mxu0 %v563
    %565 = vmatprep.subr.mxu0 0.0
    %v566 = vand.u32 %v527, 4294901760
    %567 = vmatpush1.msra.mxu0 %v566
    %568 = vmatprep.subr.mxu0 0.0
    %v569 = vand.u32 %v528, 4294901760
    %570 = vmatpush1.msra.mxu0 %v569
    %571 = vmatprep.subr.mxu0 0.0
    %v572 = vand.u32 %v529, 4294901760
    %573 = vmatpush1.msra.mxu0 %v572
    %574 = vmatprep.subr.mxu0 0.0
    %v575 = vand.u32 %v530, 4294901760
    %576 = vmatpush1.msra.mxu0 %v575
    %577 = vmatprep.subr.mxu0 0.0
    %v578 = vand.u32 %v531, 4294901760
    %579 = vmatpush1.msra.mxu0 %v578
    %580 = vmatprep.subr.mxu0 0.0
    %581 = vmatpush1.msra.mxu0 0.0
    %582 = vmatprep.subr.mxu0 0.0
    %583 = vmatpush1.msra.mxu0 0.0
    %584 = vmatprep.subr.mxu0 0.0
    %585 = vmatpush1.msra.mxu0 0.0
    %586 = vmatprep.subr.mxu0 0.0
    %587 = vmatpush1.msra.mxu0 0.0
    %588 = vmatprep.subr.mxu0 0.0
    %589 = vmatpush1.msra.mxu0 0.0
    %590 = vmatprep.subr.mxu0 0.0
    %591 = vmatpush1.msra.mxu0 0.0
    %592 = vmatprep.subr.mxu0 0.0
    %593 = vmatpush1.msra.mxu0 0.0
    %594 = vmatprep.subr.mxu0 0.0
    %595 = vmatpush1.msra.mxu0 0.0
    %596 = vmatprep.subr.mxu0 0.0
    %597 = vmatpush1.msra.mxu0 0.0
    %598 = vmatprep.subr.mxu0 0.0
    %599 = vmatpush1.msra.mxu0 0.0
    %600 = vmatprep.subr.mxu0 0.0
    %601 = vmatpush1.msra.mxu0 0.0
    %602 = vmatprep.subr.mxu0 0.0
    %603 = vmatpush1.msra.mxu0 0.0
    %604 = vmatprep.subr.mxu0 0.0
    %605 = vmatpush1.msra.mxu0 0.0
    %606 = vmatprep.subr.mxu0 0.0
    %607 = vmatpush1.msra.mxu0 0.0
    %608 = vmatprep.subr.mxu0 0.0
    %609 = vmatpush1.msra.mxu0 0.0
    %610 = vmatprep.subr.mxu0 0.0
    %611 = vmatpush1.msra.mxu0 0.0
    %612 = vmatprep.mubr.f32.mxu0 0.0
    %v613 = vand.u32 %v515, 4294901760
    %v614 = vsub.f32 %v515, %v613
    %v615 = vand.u32 %v614, 4294901760
    %v616 = vsub.f32 %v614, %v615
    %v617 = vand.u32 %v616, 4294901760
    %618 = vmatmul.mubr.f32.gmra.mrb[0].mxu0 %v617
    %v619 = vpop.f32.mrb[0].mxu0
    %v620 = vadd.f32 0.0, %v619
    %v621 = vpop.f32.mrb[0].mxu0
    %622 = vdwg.mxu0
    %623 = vmatprep.subr.mxu0 0.0
    %v624 = vand.u32 %v516, 4294901760
    %v625 = vsub.f32 %v516, %v624
    %v626 = vand.u32 %v625, 4294901760
    %v627 = vsub.f32 %v625, %v626
    %v628 = vand.u32 %v627, 4294901760
    %629 = vmatpush1.msra.mxu0 %v628
    %630 = vmatprep.subr.mxu0 0.0
    %v631 = vand.u32 %v517, 4294901760
    %v632 = vsub.f32 %v517, %v631
    %v633 = vand.u32 %v632, 4294901760
    %v634 = vsub.f32 %v632, %v633
    %v635 = vand.u32 %v634, 4294901760
    %636 = vmatpush1.msra.mxu0 %v635
    %637 = vmatprep.subr.mxu0 0.0
    %v638 = vand.u32 %v518, 4294901760
    %v639 = vsub.f32 %v518, %v638
    %v640 = vand.u32 %v639, 4294901760
    %v641 = vsub.f32 %v639, %v640
    %v642 = vand.u32 %v641, 4294901760
    %643 = vmatpush1.msra.mxu0 %v642
    %644 = vmatprep.subr.mxu0 0.0
    %v645 = vand.u32 %v519, 4294901760
    %v646 = vsub.f32 %v519, %v645
    %v647 = vand.u32 %v646, 4294901760
    %v648 = vsub.f32 %v646, %v647
    %v649 = vand.u32 %v648, 4294901760
    %650 = vmatpush1.msra.mxu0 %v649
    %651 = vmatprep.subr.mxu0 0.0
    %v652 = vand.u32 %v520, 4294901760
    %v653 = vsub.f32 %v520, %v652
    %v654 = vand.u32 %v653, 4294901760
    %v655 = vsub.f32 %v653, %v654
    %v656 = vand.u32 %v655, 4294901760
    %657 = vmatpush1.msra.mxu0 %v656
    %658 = vmatprep.subr.mxu0 0.0
    %v659 = vand.u32 %v521, 4294901760
    %v660 = vsub.f32 %v521, %v659
    %v661 = vand.u32 %v660, 4294901760
    %v662 = vsub.f32 %v660, %v661
    %v663 = vand.u32 %v662, 4294901760
    %664 = vmatpush1.msra.mxu0 %v663
    %665 = vmatprep.subr.mxu0 0.0
    %v666 = vand.u32 %v522, 4294901760
    %v667 = vsub.f32 %v522, %v666
    %v668 = vand.u32 %v667, 4294901760
    %v669 = vsub.f32 %v667, %v668
    %v670 = vand.u32 %v669, 4294901760
    %671 = vmatpush1.msra.mxu0 %v670
    %672 = vmatprep.subr.mxu0 0.0
    %v673 = vand.u32 %v523, 4294901760
    %v674 = vsub.f32 %v523, %v673
    %v675 = vand.u32 %v674, 4294901760
    %v676 = vsub.f32 %v674, %v675
    %v677 = vand.u32 %v676, 4294901760
    %678 = vmatpush1.msra.mxu0 %v677
    %679 = vmatprep.subr.mxu0 0.0
    %v680 = vand.u32 %v524, 4294901760
    %v681 = vsub.f32 %v524, %v680
    %v682 = vand.u32 %v681, 4294901760
    %v683 = vsub.f32 %v681, %v682
    %v684 = vand.u32 %v683, 4294901760
    %685 = vmatpush1.msra.mxu0 %v684
    %686 = vmatprep.subr.mxu0 0.0
    %v687 = vand.u32 %v525, 4294901760
    %v688 = vsub.f32 %v525, %v687
    %v689 = vand.u32 %v688, 4294901760
    %v690 = vsub.f32 %v688, %v689
    %v691 = vand.u32 %v690, 4294901760
    %692 = vmatpush1.msra.mxu0 %v691
    %693 = vmatprep.subr.mxu0 0.0
    %v694 = vand.u32 %v526, 4294901760
    %v695 = vsub.f32 %v526, %v694
    %v696 = vand.u32 %v695, 4294901760
    %v697 = vsub.f32 %v695, %v696
    %v698 = vand.u32 %v697, 4294901760
    %699 = vmatpush1.msra.mxu0 %v698
    %700 = vmatprep.subr.mxu0 0.0
    %v701 = vand.u32 %v527, 4294901760
    %v702 = vsub.f32 %v527, %v701
    %v703 = vand.u32 %v702, 4294901760
    %v704 = vsub.f32 %v702, %v703
    %v705 = vand.u32 %v704, 4294901760
    %706 = vmatpush1.msra.mxu0 %v705
    %707 = vmatprep.subr.mxu0 0.0
    %v708 = vand.u32 %v528, 4294901760
    %v709 = vsub.f32 %v528, %v708
    %v710 = vand.u32 %v709, 4294901760
    %v711 = vsub.f32 %v709, %v710
    %v712 = vand.u32 %v711, 4294901760
    %713 = vmatpush1.msra.mxu0 %v712
    %714 = vmatprep.subr.mxu0 0.0
    %v715 = vand.u32 %v529, 4294901760
    %v716 = vsub.f32 %v529, %v715
    %v717 = vand.u32 %v716, 4294901760
    %v718 = vsub.f32 %v716, %v717
    %v719 = vand.u32 %v718, 4294901760
    %720 = vmatpush1.msra.mxu0 %v719
    %721 = vmatprep.subr.mxu0 0.0
    %v722 = vand.u32 %v530, 4294901760
    %v723 = vsub.f32 %v530, %v722
    %v724 = vand.u32 %v723, 4294901760
    %v725 = vsub.f32 %v723, %v724
    %v726 = vand.u32 %v725, 4294901760
    %727 = vmatpush1.msra.mxu0 %v726
    %728 = vmatprep.subr.mxu0 0.0
    %v729 = vand.u32 %v531, 4294901760
    %v730 = vsub.f32 %v531, %v729
    %v731 = vand.u32 %v730, 4294901760
    %v732 = vsub.f32 %v730, %v731
    %v733 = vand.u32 %v732, 4294901760
    %734 = vmatpush1.msra.mxu0 %v733
    %735 = vmatprep.subr.mxu0 0.0
    %736 = vmatpush1.msra.mxu0 0.0
    %737 = vmatprep.subr.mxu0 0.0
    %738 = vmatpush1.msra.mxu0 0.0
    %739 = vmatprep.subr.mxu0 0.0
    %740 = vmatpush1.msra.mxu0 0.0
    %741 = vmatprep.subr.mxu0 0.0
    %742 = vmatpush1.msra.mxu0 0.0
    %743 = vmatprep.subr.mxu0 0.0
    %744 = vmatpush1.msra.mxu0 0.0
    %745 = vmatprep.subr.mxu0 0.0
    %746 = vmatpush1.msra.mxu0 0.0
    %747 = vmatprep.subr.mxu0 0.0
    %748 = vmatpush1.msra.mxu0 0.0
    %749 = vmatprep.subr.mxu0 0.0
    %750 = vmatpush1.msra.mxu0 0.0
    %751 = vmatprep.subr.mxu0 0.0
    %752 = vmatpush1.msra.mxu0 0.0
    %753 = vmatprep.subr.mxu0 0.0
    %754 = vmatpush1.msra.mxu0 0.0
    %755 = vmatprep.subr.mxu0 0.0
    %756 = vmatpush1.msra.mxu0 0.0
    %757 = vmatprep.subr.mxu0 0.0
    %758 = vmatpush1.msra.mxu0 0.0
    %759 = vmatprep.subr.mxu0 0.0
    %760 = vmatpush1.msra.mxu0 0.0
    %761 = vmatprep.subr.mxu0 0.0
    %762 = vmatpush1.msra.mxu0 0.0
    %763 = vmatprep.subr.mxu0 0.0
    %764 = vmatpush1.msra.mxu0 0.0
    %765 = vmatprep.subr.mxu0 0.0
    %766 = vmatpush1.msra.mxu0 0.0
    %767 = vmatprep.mubr.f32.mxu0 0.0
    %v768 = vand.u32 %v515, 4294901760
    %769 = vmatmul.mubr.f32.gmra.mrb[0].mxu0 %v768
    %v770 = vpop.f32.mrb[0].mxu0
    %v771 = vadd.f32 %v620, %v770
    %v772 = vpop.f32.mrb[0].mxu0
    %773 = vdwg.mxu0
    %774 = vmatprep.subr.mxu0 0.0
    %v775 = vand.u32 %v516, 4294901760
    %v776 = vsub.f32 %v516, %v775
    %777 = vmatpush1.msra.mxu0 %v776
    %778 = vmatprep.subr.mxu0 0.0
    %v779 = vand.u32 %v517, 4294901760
    %v780 = vsub.f32 %v517, %v779
    %781 = vmatpush1.msra.mxu0 %v780
    %782 = vmatprep.subr.mxu0 0.0
    %v783 = vand.u32 %v518, 4294901760
    %v784 = vsub.f32 %v518, %v783
    %785 = vmatpush1.msra.mxu0 %v784
    %786 = vmatprep.subr.mxu0 0.0
    %v787 = vand.u32 %v519, 4294901760
    %v788 = vsub.f32 %v519, %v787
    %789 = vmatpush1.msra.mxu0 %v788
    %790 = vmatprep.subr.mxu0 0.0
    %v791 = vand.u32 %v520, 4294901760
    %v792 = vsub.f32 %v520, %v791
    %793 = vmatpush1.msra.mxu0 %v792
    %794 = vmatprep.subr.mxu0 0.0
    %v795 = vand.u32 %v521, 4294901760
    %v796 = vsub.f32 %v521, %v795
    %797 = vmatpush1.msra.mxu0 %v796
    %798 = vmatprep.subr.mxu0 0.0
    %v799 = vand.u32 %v522, 4294901760
    %v800 = vsub.f32 %v522, %v799
    %801 = vmatpush1.msra.mxu0 %v800
    %802 = vmatprep.subr.mxu0 0.0
    %v803 = vand.u32 %v523, 4294901760
    %v804 = vsub.f32 %v523, %v803
    %805 = vmatpush1.msra.mxu0 %v804
    %806 = vmatprep.subr.mxu0 0.0
    %v807 = vand.u32 %v524, 4294901760
    %v808 = vsub.f32 %v524, %v807
    %809 = vmatpush1.msra.mxu0 %v808
    %810 = vmatprep.subr.mxu0 0.0
    %v811 = vand.u32 %v525, 4294901760
    %v812 = vsub.f32 %v525, %v811
    %813 = vmatpush1.msra.mxu0 %v812
    %814 = vmatprep.subr.mxu0 0.0
    %v815 = vand.u32 %v526, 4294901760
    %v816 = vsub.f32 %v526, %v815
    %817 = vmatpush1.msra.mxu0 %v816
    %818 = vmatprep.subr.mxu0 0.0
    %v819 = vand.u32 %v527, 4294901760
    %v820 = vsub.f32 %v527, %v819
    %821 = vmatpush1.msra.mxu0 %v820
    %822 = vmatprep.subr.mxu0 0.0
    %v823 = vand.u32 %v528, 4294901760
    %v824 = vsub.f32 %v528, %v823
    %825 = vmatpush1.msra.mxu0 %v824
    %826 = vmatprep.subr.mxu0 0.0
    %v827 = vand.u32 %v529, 4294901760
    %v828 = vsub.f32 %v529, %v827
    %829 = vmatpush1.msra.mxu0 %v828
    %830 = vmatprep.subr.mxu0 0.0
    %v831 = vand.u32 %v530, 4294901760
    %v832 = vsub.f32 %v530, %v831
    %833 = vmatpush1.msra.mxu0 %v832
    %834 = vmatprep.subr.mxu0 0.0
    %v835 = vand.u32 %v531, 4294901760
    %v836 = vsub.f32 %v531, %v835
    %837 = vmatpush1.msra.mxu0 %v836
    %838 = vmatprep.subr.mxu0 0.0
    %839 = vmatpush1.msra.mxu0 0.0
    %840 = vmatprep.subr.mxu0 0.0
    %841 = vmatpush1.msra.mxu0 0.0
    %842 = vmatprep.subr.mxu0 0.0
    %843 = vmatpush1.msra.mxu0 0.0
    %844 = vmatprep.subr.mxu0 0.0
    %845 = vmatpush1.msra.mxu0 0.0
    %846 = vmatprep.subr.mxu0 0.0
    %847 = vmatpush1.msra.mxu0 0.0
    %848 = vmatprep.subr.mxu0 0.0
    %849 = vmatpush1.msra.mxu0 0.0
    %850 = vmatprep.subr.mxu0 0.0
    %851 = vmatpush1.msra.mxu0 0.0
    %852 = vmatprep.subr.mxu0 0.0
    %853 = vmatpush1.msra.mxu0 0.0
    %854 = vmatprep.subr.mxu0 0.0
    %855 = vmatpush1.msra.mxu0 0.0
    %856 = vmatprep.subr.mxu0 0.0
    %857 = vmatpush1.msra.mxu0 0.0
    %858 = vmatprep.subr.mxu0 0.0
    %859 = vmatpush1.msra.mxu0 0.0
    %860 = vmatprep.subr.mxu0 0.0
    %861 = vmatpush1.msra.mxu0 0.0
    %862 = vmatprep.subr.mxu0 0.0
    %863 = vmatpush1.msra.mxu0 0.0
    %864 = vmatprep.subr.mxu0 0.0
    %865 = vmatpush1.msra.mxu0 0.0
    %866 = vmatprep.subr.mxu0 0.0
    %867 = vmatpush1.msra.mxu0 0.0
    %868 = vmatprep.subr.mxu0 0.0
    %869 = vmatpush1.msra.mxu0 0.0
    %870 = vmatprep.mubr.f32.mxu0 0.0
    %v871 = vand.u32 %v515, 4294901760
    %v872 = vsub.f32 %v515, %v871
    %873 = vmatmul.mubr.f32.gmra.mrb[0].mxu0 %v872
    %v874 = vpop.f32.mrb[0].mxu0
    %v875 = vadd.f32 %v771, %v874
    %v876 = vpop.f32.mrb[0].mxu0
    %877 = vdwg.mxu0
    %878 = vmatprep.subr.mxu0 0.0
    %v879 = vand.u32 %v516, 4294901760
    %880 = vmatpush1.msra.mxu0 %v879
    %881 = vmatprep.subr.mxu0 0.0
    %v882 = vand.u32 %v517, 4294901760
    %883 = vmatpush1.msra.mxu0 %v882
    %884 = vmatprep.subr.mxu0 0.0
    %v885 = vand.u32 %v518, 4294901760
    %886 = vmatpush1.msra.mxu0 %v885
    %887 = vmatprep.subr.mxu0 0.0
    %v888 = vand.u32 %v519, 4294901760
    %889 = vmatpush1.msra.mxu0 %v888
    %890 = vmatprep.subr.mxu0 0.0
    %v891 = vand.u32 %v520, 4294901760
    %892 = vmatpush1.msra.mxu0 %v891
    %893 = vmatprep.subr.mxu0 0.0
    %v894 = vand.u32 %v521, 4294901760
    %895 = vmatpush1.msra.mxu0 %v894
    %896 = vmatprep.subr.mxu0 0.0
    %v897 = vand.u32 %v522, 4294901760
    %898 = vmatpush1.msra.mxu0 %v897
    %899 = vmatprep.subr.mxu0 0.0
    %v900 = vand.u32 %v523, 4294901760
    %901 = vmatpush1.msra.mxu0 %v900
    %902 = vmatprep.subr.mxu0 0.0
    %v903 = vand.u32 %v524, 4294901760
    %904 = vmatpush1.msra.mxu0 %v903
    %905 = vmatprep.subr.mxu0 0.0
    %v906 = vand.u32 %v525, 4294901760
    %907 = vmatpush1.msra.mxu0 %v906
    %908 = vmatprep.subr.mxu0 0.0
    %v909 = vand.u32 %v526, 4294901760
    %910 = vmatpush1.msra.mxu0 %v909
    %911 = vmatprep.subr.mxu0 0.0
    %v912 = vand.u32 %v527, 4294901760
    %913 = vmatpush1.msra.mxu0 %v912
    %914 = vmatprep.subr.mxu0 0.0
    %v915 = vand.u32 %v528, 4294901760
    %916 = vmatpush1.msra.mxu0 %v915
    %917 = vmatprep.subr.mxu0 0.0
    %v918 = vand.u32 %v529, 4294901760
    %919 = vmatpush1.msra.mxu0 %v918
    %920 = vmatprep.subr.mxu0 0.0
    %v921 = vand.u32 %v530, 4294901760
    %922 = vmatpush1.msra.mxu0 %v921
    %923 = vmatprep.subr.mxu0 0.0
    %v924 = vand.u32 %v531, 4294901760
    %925 = vmatpush1.msra.mxu0 %v924
    %926 = vmatprep.subr.mxu0 0.0
    %927 = vmatpush1.msra.mxu0 0.0
    %928 = vmatprep.subr.mxu0 0.0
    %929 = vmatpush1.msra.mxu0 0.0
    %930 = vmatprep.subr.mxu0 0.0
    %931 = vmatpush1.msra.mxu0 0.0
    %932 = vmatprep.subr.mxu0 0.0
    %933 = vmatpush1.msra.mxu0 0.0
    %934 = vmatprep.subr.mxu0 0.0
    %935 = vmatpush1.msra.mxu0 0.0
    %936 = vmatprep.subr.mxu0 0.0
    %937 = vmatpush1.msra.mxu0 0.0
    %938 = vmatprep.subr.mxu0 0.0
    %939 = vmatpush1.msra.mxu0 0.0
    %940 = vmatprep.subr.mxu0 0.0
    %941 = vmatpush1.msra.mxu0 0.0
    %942 = vmatprep.subr.mxu0 0.0
    %943 = vmatpush1.msra.mxu0 0.0
    %944 = vmatprep.subr.mxu0 0.0
    %945 = vmatpush1.msra.mxu0 0.0
    %946 = vmatprep.subr.mxu0 0.0
    %947 = vmatpush1.msra.mxu0 0.0
    %948 = vmatprep.subr.mxu0 0.0
    %949 = vmatpush1.msra.mxu0 0.0
    %950 = vmatprep.subr.mxu0 0.0
    %951 = vmatpush1.msra.mxu0 0.0
    %952 = vmatprep.subr.mxu0 0.0
    %953 = vmatpush1.msra.mxu0 0.0
    %954 = vmatprep.subr.mxu0 0.0
    %955 = vmatpush1.msra.mxu0 0.0
    %956 = vmatprep.subr.mxu0 0.0
    %957 = vmatpush1.msra.mxu0 0.0
    %958 = vmatprep.mubr.f32.mxu0 0.0
    %v959 = vand.u32 %v515, 4294901760
    %v960 = vsub.f32 %v515, %v959
    %v961 = vand.u32 %v960, 4294901760
    %962 = vmatmul.mubr.f32.gmra.mrb[0].mxu0 %v961
    %v963 = vpop.f32.mrb[0].mxu0
    %v964 = vadd.f32 %v875, %v963
    %v965 = vpop.f32.mrb[0].mxu0
    %966 = vdwg.mxu0
    %967 = vmatprep.subr.mxu0 0.0
    %v968 = vand.u32 %v516, 4294901760
    %v969 = vsub.f32 %v516, %v968
    %v970 = vand.u32 %v969, 4294901760
    %971 = vmatpush1.msra.mxu0 %v970
    %972 = vmatprep.subr.mxu0 0.0
    %v973 = vand.u32 %v517, 4294901760
    %v974 = vsub.f32 %v517, %v973
    %v975 = vand.u32 %v974, 4294901760
    %976 = vmatpush1.msra.mxu0 %v975
    %977 = vmatprep.subr.mxu0 0.0
    %v978 = vand.u32 %v518, 4294901760
    %v979 = vsub.f32 %v518, %v978
    %v980 = vand.u32 %v979, 4294901760
    %981 = vmatpush1.msra.mxu0 %v980
    %982 = vmatprep.subr.mxu0 0.0
    %v983 = vand.u32 %v519, 4294901760
    %v984 = vsub.f32 %v519, %v983
    %v985 = vand.u32 %v984, 4294901760
    %986 = vmatpush1.msra.mxu0 %v985
    %987 = vmatprep.subr.mxu0 0.0
    %v988 = vand.u32 %v520, 4294901760
    %v989 = vsub.f32 %v520, %v988
    %v990 = vand.u32 %v989, 4294901760
    %991 = vmatpush1.msra.mxu0 %v990
    %992 = vmatprep.subr.mxu0 0.0
    %v993 = vand.u32 %v521, 4294901760
    %v994 = vsub.f32 %v521, %v993
    %v995 = vand.u32 %v994, 4294901760
    %996 = vmatpush1.msra.mxu0 %v995
    %997 = vmatprep.subr.mxu0 0.0
    %v998 = vand.u32 %v522, 4294901760
    %v999 = vsub.f32 %v522, %v998
    %v1000 = vand.u32 %v999, 4294901760
    %1001 = vmatpush1.msra.mxu0 %v1000
    %1002 = vmatprep.subr.mxu0 0.0
    %v1003 = vand.u32 %v523, 4294901760
    %v1004 = vsub.f32 %v523, %v1003
    %v1005 = vand.u32 %v1004, 4294901760
    %1006 = vmatpush1.msra.mxu0 %v1005
    %1007 = vmatprep.subr.mxu0 0.0
    %v1008 = vand.u32 %v524, 4294901760
    %v1009 = vsub.f32 %v524, %v1008
    %v1010 = vand.u32 %v1009, 4294901760
    %1011 = vmatpush1.msra.mxu0 %v1010
    %1012 = vmatprep.subr.mxu0 0.0
    %v1013 = vand.u32 %v525, 4294901760
    %v1014 = vsub.f32 %v525, %v1013
    %v1015 = vand.u32 %v1014, 4294901760
    %1016 = vmatpush1.msra.mxu0 %v1015
    %1017 = vmatprep.subr.mxu0 0.0
    %v1018 = vand.u32 %v526, 4294901760
    %v1019 = vsub.f32 %v526, %v1018
    %v1020 = vand.u32 %v1019, 4294901760
    %1021 = vmatpush1.msra.mxu0 %v1020
    %1022 = vmatprep.subr.mxu0 0.0
    %v1023 = vand.u32 %v527, 4294901760
    %v1024 = vsub.f32 %v527, %v1023
    %v1025 = vand.u32 %v1024, 4294901760
    %1026 = vmatpush1.msra.mxu0 %v1025
    %1027 = vmatprep.subr.mxu0 0.0
    %v1028 = vand.u32 %v528, 4294901760
    %v1029 = vsub.f32 %v528, %v1028
    %v1030 = vand.u32 %v1029, 4294901760
    %1031 = vmatpush1.msra.mxu0 %v1030
    %1032 = vmatprep.subr.mxu0 0.0
    %v1033 = vand.u32 %v529, 4294901760
    %v1034 = vsub.f32 %v529, %v1033
    %v1035 = vand.u32 %v1034, 4294901760
    %1036 = vmatpush1.msra.mxu0 %v1035
    %1037 = vmatprep.subr.mxu0 0.0
    %v1038 = vand.u32 %v530, 4294901760
    %v1039 = vsub.f32 %v530, %v1038
    %v1040 = vand.u32 %v1039, 4294901760
    %1041 = vmatpush1.msra.mxu0 %v1040
    %1042 = vmatprep.subr.mxu0 0.0
    %v1043 = vand.u32 %v531, 4294901760
    %v1044 = vsub.f32 %v531, %v1043
    %v1045 = vand.u32 %v1044, 4294901760
    %1046 = vmatpush1.msra.mxu0 %v1045
    %1047 = vmatprep.subr.mxu0 0.0
    %1048 = vmatpush1.msra.mxu0 0.0
    %1049 = vmatprep.subr.mxu0 0.0
    %1050 = vmatpush1.msra.mxu0 0.0
    %1051 = vmatprep.subr.mxu0 0.0
    %1052 = vmatpush1.msra.mxu0 0.0
    %1053 = vmatprep.subr.mxu0 0.0
    %1054 = vmatpush1.msra.mxu0 0.0
    %1055 = vmatprep.subr.mxu0 0.0
    %1056 = vmatpush1.msra.mxu0 0.0
    %1057 = vmatprep.subr.mxu0 0.0
    %1058 = vmatpush1.msra.mxu0 0.0
    %1059 = vmatprep.subr.mxu0 0.0
    %1060 = vmatpush1.msra.mxu0 0.0
    %1061 = vmatprep.subr.mxu0 0.0
    %1062 = vmatpush1.msra.mxu0 0.0
    %1063 = vmatprep.subr.mxu0 0.0
    %1064 = vmatpush1.msra.mxu0 0.0
    %1065 = vmatprep.subr.mxu0 0.0
    %1066 = vmatpush1.msra.mxu0 0.0
    %1067 = vmatprep.subr.mxu0 0.0
    %1068 = vmatpush1.msra.mxu0 0.0
    %1069 = vmatprep.subr.mxu0 0.0
    %1070 = vmatpush1.msra.mxu0 0.0
    %1071 = vmatprep.subr.mxu0 0.0
    %1072 = vmatpush1.msra.mxu0 0.0
    %1073 = vmatprep.subr.mxu0 0.0
    %1074 = vmatpush1.msra.mxu0 0.0
    %1075 = vmatprep.subr.mxu0 0.0
    %1076 = vmatpush1.msra.mxu0 0.0
    %1077 = vmatprep.subr.mxu0 0.0
    %1078 = vmatpush1.msra.mxu0 0.0
    %1079 = vmatprep.mubr.f32.mxu0 0.0
    %v1080 = vand.u32 %v515, 4294901760
    %1081 = vmatmul.mubr.f32.gmra.mrb[0].mxu0 %v1080
    %v1082 = vpop.f32.mrb[0].mxu0
    %v1083 = vadd.f32 %v964, %v1082
    %v1084 = vpop.f32.mrb[0].mxu0
    %1085 = vdwg.mxu0
    %1086 = vmatprep.subr.mxu0 0.0
    %v1087 = vand.u32 %v516, 4294901760
    %1088 = vmatpush1.msra.mxu0 %v1087
    %1089 = vmatprep.subr.mxu0 0.0
    %v1090 = vand.u32 %v517, 4294901760
    %1091 = vmatpush1.msra.mxu0 %v1090
    %1092 = vmatprep.subr.mxu0 0.0
    %v1093 = vand.u32 %v518, 4294901760
    %1094 = vmatpush1.msra.mxu0 %v1093
    %1095 = vmatprep.subr.mxu0 0.0
    %v1096 = vand.u32 %v519, 4294901760
    %1097 = vmatpush1.msra.mxu0 %v1096
    %1098 = vmatprep.subr.mxu0 0.0
    %v1099 = vand.u32 %v520, 4294901760
    %1100 = vmatpush1.msra.mxu0 %v1099
    %1101 = vmatprep.subr.mxu0 0.0
    %v1102 = vand.u32 %v521, 4294901760
    %1103 = vmatpush1.msra.mxu0 %v1102
    %1104 = vmatprep.subr.mxu0 0.0
    %v1105 = vand.u32 %v522, 4294901760
    %1106 = vmatpush1.msra.mxu0 %v1105
    %1107 = vmatprep.subr.mxu0 0.0
    %v1108 = vand.u32 %v523, 4294901760
    %1109 = vmatpush1.msra.mxu0 %v1108
    %1110 = vmatprep.subr.mxu0 0.0
    %v1111 = vand.u32 %v524, 4294901760
    %1112 = vmatpush1.msra.mxu0 %v1111
    %1113 = vmatprep.subr.mxu0 0.0
    %v1114 = vand.u32 %v525, 4294901760
    %1115 = vmatpush1.msra.mxu0 %v1114
    %1116 = vmatprep.subr.mxu0 0.0
    %v1117 = vand.u32 %v526, 4294901760
    %1118 = vmatpush1.msra.mxu0 %v1117
    %1119 = vmatprep.subr.mxu0 0.0
    %v1120 = vand.u32 %v527, 4294901760
    %1121 = vmatpush1.msra.mxu0 %v1120
    %1122 = vmatprep.subr.mxu0 0.0
    %v1123 = vand.u32 %v528, 4294901760
    %1124 = vmatpush1.msra.mxu0 %v1123
    %1125 = vmatprep.subr.mxu0 0.0
    %v1126 = vand.u32 %v529, 4294901760
    %1127 = vmatpush1.msra.mxu0 %v1126
    %1128 = vmatprep.subr.mxu0 0.0
    %v1129 = vand.u32 %v530, 4294901760
    %1130 = vmatpush1.msra.mxu0 %v1129
    %1131 = vmatprep.subr.mxu0 0.0
    %v1132 = vand.u32 %v531, 4294901760
    %1133 = vmatpush1.msra.mxu0 %v1132
    %1134 = vmatprep.subr.mxu0 0.0
    %1135 = vmatpush1.msra.mxu0 0.0
    %1136 = vmatprep.subr.mxu0 0.0
    %1137 = vmatpush1.msra.mxu0 0.0
    %1138 = vmatprep.subr.mxu0 0.0
    %1139 = vmatpush1.msra.mxu0 0.0
    %1140 = vmatprep.subr.mxu0 0.0
    %1141 = vmatpush1.msra.mxu0 0.0
    %1142 = vmatprep.subr.mxu0 0.0
    %1143 = vmatpush1.msra.mxu0 0.0
    %1144 = vmatprep.subr.mxu0 0.0
    %1145 = vmatpush1.msra.mxu0 0.0
    %1146 = vmatprep.subr.mxu0 0.0
    %1147 = vmatpush1.msra.mxu0 0.0
    %1148 = vmatprep.subr.mxu0 0.0
    %1149 = vmatpush1.msra.mxu0 0.0
    %1150 = vmatprep.subr.mxu0 0.0
    %1151 = vmatpush1.msra.mxu0 0.0
    %1152 = vmatprep.subr.mxu0 0.0
    %1153 = vmatpush1.msra.mxu0 0.0
    %1154 = vmatprep.subr.mxu0 0.0
    %1155 = vmatpush1.msra.mxu0 0.0
    %1156 = vmatprep.subr.mxu0 0.0
    %1157 = vmatpush1.msra.mxu0 0.0
    %1158 = vmatprep.subr.mxu0 0.0
    %1159 = vmatpush1.msra.mxu0 0.0
    %1160 = vmatprep.subr.mxu0 0.0
    %1161 = vmatpush1.msra.mxu0 0.0
    %1162 = vmatprep.subr.mxu0 0.0
    %1163 = vmatpush1.msra.mxu0 0.0
    %1164 = vmatprep.subr.mxu0 0.0
    %1165 = vmatpush1.msra.mxu0 0.0
    %1166 = vmatprep.mubr.f32.mxu0 0.0
    %v1167 = vand.u32 %v515, 4294901760
    %1168 = vmatmul.mubr.f32.gmra.mrb[0].mxu0 %v1167
    %v1169 = vpop.f32.mrb[0].mxu0
    %v1170 = vadd.f32 %v1083, %v1169
    %v1171 = vpop.f32.mrb[0].mxu0
    %1172 = vdwg.mxu0
    %1173 = vst [vmem:[#allocation8] sm:$0xff] %v1170
    // Predicated region
    $region30: #{tpu_custom_call.1} parent=1 // pred_check
      _
    $region31: #{tpu_custom_call.1} parent=1 // pred_check_branch
      %1175 = sbr.rel (0) target = $region33
    $region32: #{tpu_custom_call.1} parent=1 // pred_region
      %s1177 = ssub.s32 128, 128
      %1178 = vsyncadd [#allocation4], %s1177
      %s1180 = sshll.u32 [#allocation8], 4
      %s1181 = int_to_ptr.vmem [resolvable:$true] %s1180
      %1183 = dma.vmem_to_hbm [thread:$0]  %s1181, 128, %s4, [#allocation4]
    $region33: #{tpu_custom_call.1} parent=1 // pred_fallthru
      _
    // Predicated region
    $region34: #{tpu_custom_call.1} parent=1 // pred_check
      _
    $region35: #{tpu_custom_call.1} parent=1 // pred_check_branch
      %1185 = sbr.rel (0) target = $region37
    $region36: #{tpu_custom_call.1} parent=1 // pred_region
      %1186 = dma.done [#allocation4], 128
    $region37: #{tpu_custom_call.1} parent=1 // pred_fallthru
      _
    %1187 = vsyncpa [#allocation3], 1
    %1188 = vsyncpa [#allocation6], 1
    %1189 = vsyncpa [#allocation4], 1

</llo_original>
